<compile_context>
chip_gen: v7x
topology: tpu7x:2x2x1
jax: 0.10.0
libtpu: 0.0.40
codegen_flags: <defaults>
</compile_context>

<pallas_src>
import jax
import jax.numpy as jnp
from jax.experimental import pallas as pl
from jax.experimental.pallas import tpu as pltpu


LANE_MAX = 1024  # preferred lane-dense width (multiple of 128)


def _conv1x1_prelu_kernel(p_ref, x_ref, o_ref):
    # p_ref: (3,) [w, b, a] in SMEM.  x_ref / o_ref: 2-D VMEM tiles.
    w = p_ref[0]
    b = p_ref[1]
    a = p_ref[2]
    y = x_ref[...] * w + b                      # 1x1 conv == elementwise affine
    o_ref[...] = jnp.where(y > 0.0, y, a * y)   # PReLU


def _chip_config():
    """(row_tile, vmem_limit_bytes or None, grid-dim semantics) per TPU gen."""
    try:
        kind = jax.devices()[0].device_kind.lower()
    except Exception:
        kind = ""
    if "v7" in kind:
        # 8 MiB blocks -> 32 MiB double-buffered io; 64 MiB physical VMEM.
        return 2048, 48 << 20, pltpu.CORE_PARALLEL
    if "v6" in kind:
        # 4 MiB blocks -> 16 MiB double-buffered io; 128 MiB physical VMEM.
        return 1024, 64 << 20, pltpu.PARALLEL
    # v5e / unknown: 2 MiB blocks -> 8 MiB, fits the 16 MiB default scoped VMEM.
    return 512, None, pltpu.PARALLEL


@jax.jit
def conv1x1_prelu(x_nchw, weight, bias, prelu_a):
    """x_nchw: (N, 1, H, W) float32. weight/bias/prelu_a: scalars (shape ())."""
    N, C, H, W = x_nchw.shape
    assert C == 1, "module is Conv2d(1, 1, 1)"
    total = N * C * H * W

    row_tile, vmem_limit, dim_sem = _chip_config()
    target_elems = row_tile * LANE_MAX  # elements per block (row_tile * 4 KiB)

    # Pack the three scalars into a single SMEM operand.
    params = jnp.stack([
        jnp.asarray(weight, jnp.float32).reshape(()),
        jnp.asarray(bias, jnp.float32).reshape(()),
        jnp.asarray(prelu_a, jnp.float32).reshape(()),
    ])

    # Zero-copy 2-D presentation (reshape of a contiguous array is free).
    lane = None
    for cand in (1024, 512, 256, 128):
        if total % cand == 0:
            lane = cand
            break
    if lane is not None:
        x2d = x_nchw.reshape(total // lane, lane)          # lane-dense slab
    else:
        # Non-128-multiple element count: natural 2-D view, still no pad/copy.
        lane = W
        x2d = x_nchw.reshape(N * C * H, W)
    rows = x2d.shape[0]

    # Row tile: full extent if it fits, otherwise a multiple-of-8 tile capped at
    # ~target_elems per block (Pallas masks the ragged last block's writes).
    cap = max(8, (target_elems // lane) // 8 * 8)
    block_rows = rows if rows <= cap else cap
    grid = (pl.cdiv(rows, block_rows),)

    cp_kwargs = dict(dimension_semantics=(dim_sem,))
    if vmem_limit is not None:
        cp_kwargs["vmem_limit_bytes"] = vmem_limit

    out2d = pl.pallas_call(
        _conv1x1_prelu_kernel,
        out_shape=jax.ShapeDtypeStruct(x2d.shape, x2d.dtype),
        grid=grid,
        in_specs=[
            pl.BlockSpec(memory_space=pltpu.MemorySpace.SMEM),   # [w, b, a]
            pl.BlockSpec((block_rows, lane), lambda i: (i, 0)),  # x tile
        ],
        out_specs=pl.BlockSpec((block_rows, lane), lambda i: (i, 0)),
        compiler_params=pltpu.CompilerParams(**cp_kwargs),
    )(params, x2d)

    return out2d.reshape(N, C, H, W)


if __name__ == "__main__":
    key = jax.random.PRNGKey(0)
    kx, kw, kb, kx2, kx3 = jax.random.split(key, 5)

    # Parameters implied by nn.Conv2d(1,1,1) (weight (1,1,1,1), bias (1,)) and
    # nn.PReLU() (single slope, PyTorch default 0.25) -> scalars here.
    weight = jax.random.uniform(kw, (), jnp.float32, minval=-1.0, maxval=1.0)
    bias = jax.random.uniform(kb, (), jnp.float32, minval=-1.0, maxval=1.0)
    prelu_a = jnp.float32(0.25)

    def ref_fn(x):
        y = x * weight + bias
        return jnp.where(y > 0, y, prelu_a * y)

    # Main case (NCHW, C=1).
    x = jax.random.normal(kx, (2, 1, 16, 16), jnp.float32)
    out = jax.block_until_ready(conv1x1_prelu(x, weight, bias, prelu_a))
    assert out.shape == (2, 1, 16, 16)
    assert jnp.allclose(out, ref_fn(x), atol=1e-6, rtol=1e-6)

    # Non-128-multiple element count -> natural-view fallback path (no pad).
    x2 = jax.random.normal(kx2, (2, 1, 7, 9), jnp.float32)
    out2 = jax.block_until_ready(conv1x1_prelu(x2, weight, bias, prelu_a))
    assert out2.shape == (2, 1, 7, 9)
    assert jnp.allclose(out2, ref_fn(x2), atol=1e-6, rtol=1e-6)

    # 1024-aligned element count -> lane-dense (rows, 1024) path.
    x3 = jax.random.normal(kx3, (4, 1, 32, 32), jnp.float32)
    out3 = jax.block_until_ready(conv1x1_prelu(x3, weight, bias, prelu_a))
    assert out3.shape == (4, 1, 32, 32)
    assert jnp.allclose(out3, ref_fn(x3), atol=1e-6, rtol=1e-6)

    print("KERNEL_OK")
</pallas_src>

<mosaic_0001>
module attributes {stable_mosaic.version = 11 : i64} {
  func.func @_conv1x1_prelu_kernel(%arg0: i32, %arg1: memref<3xf32, #tpu.memory_space<smem>>, %arg2: memref<1x512xf32, #tpu.memory_space<vmem>>, %arg3: memref<1x512xf32, #tpu.memory_space<vmem>>) attributes {dimension_semantics = [#tpu.dimension_semantics<parallel>], iteration_bounds = array<i64: 1>, scalar_prefetch = 0 : i64, scratch_operands = 0 : i64, tpu.core_type = #tpu.core_type<tc>, window_params = [{transform_indices = @transform_0, window_bounds = array<i64: 3>}, {transform_indices = @transform_1, window_bounds = array<i64: 1, 512>}, {transform_indices = @transform_2, window_bounds = array<i64: 1, 512>}]} {
    %c0 = arith.constant 0 : index
    %0 = memref.load %arg1[%c0] : memref<3xf32, #tpu.memory_space<smem>>
    %c1 = arith.constant 1 : index
    %1 = memref.load %arg1[%c1] : memref<3xf32, #tpu.memory_space<smem>>
    %c2 = arith.constant 2 : index
    %2 = memref.load %arg1[%c2] : memref<3xf32, #tpu.memory_space<smem>>
    %c0_0 = arith.constant 0 : index
    %c0_1 = arith.constant 0 : index
    %3 = vector.load %arg2[%c0_0, %c0_1] : memref<1x512xf32, #tpu.memory_space<vmem>>, vector<1x512xf32>
    %4 = vector.broadcast %0 : f32 to vector<1x512xf32>
    %5 = arith.mulf %3, %4 : vector<1x512xf32>
    %6 = vector.broadcast %1 : f32 to vector<1x512xf32>
    %7 = arith.addf %5, %6 : vector<1x512xf32>
    %cst = arith.constant 0.000000e+00 : f32
    %8 = vector.broadcast %cst : f32 to vector<1x512xf32>
    %9 = arith.cmpf ogt, %7, %8 : vector<1x512xf32>
    %10 = vector.broadcast %2 : f32 to vector<1x512xf32>
    %11 = arith.mulf %10, %7 : vector<1x512xf32>
    %12 = arith.select %9, %7, %11 : vector<1x512xi1>, vector<1x512xf32>
    %c0_2 = arith.constant 0 : index
    %c0_3 = arith.constant 0 : index
    %13 = vector.load %arg3[%c0_2, %c0_3] : memref<1x512xf32, #tpu.memory_space<vmem>>, vector<1x512xf32>
    tpu.vector_store %arg3[%c0_2, %c0_3], %12 {strides = array<i32>} : memref<1x512xf32, #tpu.memory_space<vmem>>, vector<1x512xf32>,
    return
  }
  func.func @transform_0(%arg0: i32) -> i32 {
    %c0_i32 = arith.constant 0 : i32
    %c0_i32_0 = arith.constant 0 : i32
    return %c0_i32 : i32
  }
  func.func @transform_1(%arg0: i32) -> (i32, i32) {
    %c0_i32 = arith.constant 0 : i32
    %c0_i32_0 = arith.constant 0 : i32
    return %arg0, %c0_i32 : i32, i32
  }
  func.func @transform_2(%arg0: i32) -> (i32, i32) {
    %c0_i32 = arith.constant 0 : i32
    %c0_i32_0 = arith.constant 0 : i32
    return %arg0, %c0_i32 : i32, i32
  }
}

</mosaic_0001>

<llo_original>
// kernel: conv1x1_prelu.1
$region0: #{conv1x1_prelu.1}
  #allocation0 [shape = 'u32[]', space=smem, size = 0x4, offset = 0x4, fixed_abs, tag = 'smem constant byte address 0x4 - core index']
  #allocation1 [shape = 'u32[144,128]{1,0:T(1,128)}', space=vmem, size = 0x12000, scoped, tag = 'internal scratch']
  %s0 = inlined_call_operand.vmem [shape: f32[3], index: 0, kind: input, shape index: {}]
  %s1 = inlined_call_operand.vmem [shape: f32[1,512], index: 1, kind: input, shape index: {}]
  %s2 = inlined_call_operand.vmem [shape: f32[1,512], index: 2, kind: output, shape index: {}]
  %s3 = sld [smem:[#allocation0]]
  $region22: #{conv1x1_prelu.1} parent=0
    _
  %s5 = ssub.s32 1, %s3
  %s6 = scalar_select 0, %s5, %s3
  $region1: #{conv1x1_prelu.1} parent=0
    #allocation2 [shape = 'u8[512]{0}', space=smem, size = 0x200, scoped, tag = 'input window, operand 0, single buffered']
    #allocation3 [shape = 's32[1]{0}', space=sflag, size = 0x4, scoped, tag = 'scoped memory for conv1x1_prelu.1']
    %7 = vsyncpa [#allocation3], 0
    // Predicated region
    $region2: #{conv1x1_prelu.1} parent=1 // pred_check
      _
    $region3: #{conv1x1_prelu.1} parent=1 // pred_check_branch
      %9 = sbr.rel (0) target = $region5
    $region4: #{conv1x1_prelu.1} parent=1 // pred_region
      %s11 = ssub.s32 16, 16
      %12 = vsyncadd [#allocation3], %s11
      %s14 = sshll.u32 %s0, 4
      %s15 = int_to_ptr.vmem [resolvable:$true] %s14
      %17 = dma.vmem_to_smem %s15, 16, [#allocation2], [#allocation3]
    $region5: #{conv1x1_prelu.1} parent=1 // pred_fallthru
      _
    // Predicated region
    $region6: #{conv1x1_prelu.1} parent=1 // pred_check
      _
    $region7: #{conv1x1_prelu.1} parent=1 // pred_check_branch
      %19 = sbr.rel (0) target = $region9
    $region8: #{conv1x1_prelu.1} parent=1 // pred_region
      _
    $region9: #{conv1x1_prelu.1} parent=1 // pred_fallthru
      _
    // Predicated region
    $region10: #{conv1x1_prelu.1} parent=1 // pred_check
      _
    $region11: #{conv1x1_prelu.1} parent=1 // pred_check_branch
      %21 = sbr.rel (0) target = $region13
    $region12: #{conv1x1_prelu.1} parent=1 // pred_region
      %22 = dma.done [#allocation3], 16
    $region13: #{conv1x1_prelu.1} parent=1 // pred_fallthru
      _
    %23 = sfence
    %s24 = sld [smem:[#allocation2]]
    %s25 = sld [smem:[#allocation2 + $0x1]]
    %s26 = sld [smem:[#allocation2 + $0x2]]
    %v27 = vld [vmem:[%s1] sm:$0xf]
    %v28 = vstv %s24
    %v29 = vmul.f32 %v27, %v28
    %v30 = vstv %s25
    %v31 = vadd.f32 %v29, %v30
    %vm32 = vcmp.gt.f32.partialorder %v31, 0.0
    %v33 = vstv %s26
    %v34 = vmul.f32 %v33, %v31
    %v35 = vsel %vm32, %v31, %v34
    %v36 = vlaneseq
    %vm37 = vcmp.ge.s32.totalorder %v36, 0
    %vm38 = vcmp.lt.s32.totalorder %v36, 512
    %vm39 = vmand %vm37, %vm38
    %40 = vst.msk [vmem:[%s2] sm:$0xf] %vm39, %v35
    // Predicated region
    $region14: #{conv1x1_prelu.1} parent=1 // pred_check
      _
    $region15: #{conv1x1_prelu.1} parent=1 // pred_check_branch
      %42 = sbr.rel (0) target = $region17
    $region16: #{conv1x1_prelu.1} parent=1 // pred_region
      _
    $region17: #{conv1x1_prelu.1} parent=1 // pred_fallthru
      _
    // Predicated region
    $region18: #{conv1x1_prelu.1} parent=1 // pred_check
      _
    $region19: #{conv1x1_prelu.1} parent=1 // pred_check_branch
      %44 = sbr.rel (0) target = $region21
    $region20: #{conv1x1_prelu.1} parent=1 // pred_region
      _
    $region21: #{conv1x1_prelu.1} parent=1 // pred_fallthru
      _
    %45 = vsyncpa [#allocation3], 1

</llo_original>
